<compile_context>
chip_gen: v7x
topology: tpu7x:2x2x1
jax: 0.10.0
libtpu: 0.0.40
codegen_flags: <defaults>
</compile_context>

<pallas_src>
import math

import jax
import jax.numpy as jnp
from jax.experimental import pallas as pl
from jax.experimental.pallas import tpu as pltpu


_FAST_PATH_BYTES = 256 * 1024  # below this, replication is a fused broadcast


def _replicate_kernel(x_ref, o_ref):
    # The output's leading K axis is squeezed away by the BlockSpec, so this is
    # a straight full-tile copy of the (TM, L) input block into the k-th slice.
    o_ref[...] = x_ref[...]


def _vmem_budget():
    """(target block bytes, scoped vmem_limit_bytes) tuned per TPU generation."""
    try:
        cap = int(pltpu.get_tpu_info().vmem_capacity_bytes)
    except Exception:
        cap = 0
    if cap and cap <= 64 * 1024 * 1024:
        # v7x-class: 64 MiB physical VMEM per TensorCore -- leave headroom.
        return 6 * 1024 * 1024, 48 * 1024 * 1024
    if cap:
        # v5e / v6e: 128 MiB physical VMEM.
        return 6 * 1024 * 1024, 64 * 1024 * 1024
    # Unknown generation: conservative sizes that are safe everywhere.
    return 4 * 1024 * 1024, 40 * 1024 * 1024


def _choose_row_tile(rows: int, lane: int, itemsize: int, target_bytes: int) -> int:
    """Row-tile size: ~target_bytes per block, dtype-aware sublane granularity."""
    sub = {1: 32, 2: 16, 4: 8}.get(itemsize, 8)
    target_rows = max(sub, target_bytes // (lane * itemsize))
    tm = (target_rows // sub) * sub
    if tm >= rows:
        return rows  # full-extent rows block is always layout-legal
    return max(sub, tm)


def _replicate_pallas(x: jax.Array, k: int) -> jax.Array:
    """K-way replication of x along a new leading axis, as a Pallas copy kernel."""
    orig_shape = x.shape
    total = math.prod(orig_shape) if orig_shape else 1
    itemsize = jnp.dtype(x.dtype).itemsize

    flat = x.reshape(total)

    # Lane-dense layout: widest multiple-of-128 lane width that divides total.
    lane = None
    padded = total
    for cand in (4096, 2048, 1024, 512, 256, 128):
        if total % cand == 0:
            lane = cand
            break
    if lane is None:
        # Not a multiple of 128: pad the flat array (pure layout plumbing, pad
        # is sliced off after the kernel) instead of degrading to masked,
        # 1-sublane partial stores on a single giant block.
        lane = 4096 if total >= 4096 else 128
        padded = ((total + lane - 1) // lane) * lane
        flat = jnp.pad(flat, (0, padded - total))
    rows = padded // lane

    target_bytes, vmem_limit = _vmem_budget()
    tm = _choose_row_tile(rows, lane, itemsize, target_bytes)
    grid_rows = pl.cdiv(rows, tm)  # ragged last block is masked by Pallas

    x2d = flat.reshape(rows, lane)

    out = pl.pallas_call(
        _replicate_kernel,
        out_shape=jax.ShapeDtypeStruct((k, rows, lane), x.dtype),
        grid_spec=pltpu.PrefetchScalarGridSpec(
            num_scalar_prefetch=0,
            # Tile axis OUTER, K INNER: the input block's index_map does not
            # depend on kk, so it stays resident across the K inner steps ->
            # 1 HBM read + K HBM writes per tile.
            grid=(grid_rows, k),
            in_specs=[
                pl.BlockSpec((tm, lane), lambda t, kk: (t, 0)),
            ],
            out_specs=pl.BlockSpec(
                (pl.Squeezed(), tm, lane), lambda t, kk: (kk, t, 0)
            ),
        ),
        compiler_params=pltpu.CompilerParams(
            # Shard the tile axis across v7x's two TensorCores; keeping K
            # "arbitrary" preserves per-core input residency. Neutral on
            # single-core v5e/v6e.
            dimension_semantics=("parallel", "arbitrary"),
            vmem_limit_bytes=vmem_limit,
        ),
    )(x2d)

    out_flat = out.reshape(k, padded)
    if padded != total:
        out_flat = out_flat[:, :total]
    return out_flat.reshape((k,) + orig_shape)


def _forward_impl(x: jax.Array, weight_tensor_for_grad: jax.Array) -> jax.Array:
    k = int(weight_tensor_for_grad.shape[0])
    total = math.prod(x.shape) if x.shape else 1
    itemsize = jnp.dtype(x.dtype).itemsize
    if total * itemsize < _FAST_PATH_BYTES:
        # Tiny inputs: kernel launch overhead dominates; a broadcast also lets
        # XLA fuse the replication away if the output is consumed elementwise.
        return jnp.broadcast_to(x[None], (k,) + x.shape)
    return _replicate_pallas(x, k)


# ---- custom VJP: forward is the Pallas replication, backward re-weights ----
@jax.custom_vjp
def grad_balancer_forward(x: jax.Array, weight_tensor_for_grad: jax.Array) -> jax.Array:
    return _forward_impl(x, weight_tensor_for_grad)


def _gb_fwd(x, weight_tensor_for_grad):
    return _forward_impl(x, weight_tensor_for_grad), (weight_tensor_for_grad,)


def _gb_bwd(res, g):
    (factor,) = res
    # g has shape (K, *x.shape); grad_x = sum_k factor[k] * g[k], accumulated
    # in f32 (matters for bf16 gradients / larger K), then cast back.
    grad_x = jnp.einsum(
        "k,k...->...", factor, g, preferred_element_type=jnp.float32
    ).astype(g.dtype)
    return grad_x, jnp.zeros_like(factor)


grad_balancer_forward.defvjp(_gb_fwd, _gb_bwd)


class GradBalancer:
    """JAX analogue of the PyTorch Grad_Balancer wrapper.

    Forward: Pallas kernel (or fused broadcast for tiny inputs) that stacks x
    K times along a new leading axis.
    Backward: gradient slices re-weighted by `weight_tensor_for_grad` via
    jax.custom_vjp (plain JAX -- not on the kernel hot path).
    """

    def __init__(self, weight_tensor_for_grad: jax.Array | None = None):
        if weight_tensor_for_grad is None:
            weight_tensor_for_grad = jnp.array([1.0, 1.0], dtype=jnp.float32)
        weight_tensor_for_grad = jnp.asarray(weight_tensor_for_grad)
        if weight_tensor_for_grad.ndim != 1:
            raise Exception("Param:weight_tensor_for_grad should be a vector.")
        # Positivity check done ONCE here on a concrete array (no per-call
        # device->host sync, forward stays jittable).
        w_host = jax.device_get(weight_tensor_for_grad)
        for i in range(len(w_host)):
            if float(w_host[i]) <= 0.0:
                raise Exception(
                    f"The [{i}] element in the factor tensor is <=0.. It must be >0.."
                )
        self.weight_tensor_for_grad = weight_tensor_for_grad

    def __call__(self, x: jax.Array) -> jax.Array:
        return grad_balancer_forward(x, self.weight_tensor_for_grad)


if __name__ == "__main__":
    key = jax.random.PRNGKey(0)
    k0, k1, k2 = jax.random.split(key, 3)

    # Deterministic positive factor vector of length 3 (forward only uses its
    # length; values affect only the backward pass).
    factor = jnp.array([1.0, 2.0, 0.5], dtype=jnp.float32)
    balancer = GradBalancer(factor)
    K = int(factor.shape[0])

    # 1) Small NCHW input (8 KiB): exercises the fused-broadcast fast path.
    x_small = jax.random.normal(k0, (2, 4, 16, 16), dtype=jnp.float32)
    out_small = jax.block_until_ready(balancer(x_small))
    ref_small = jnp.broadcast_to(x_small[None], (K,) + x_small.shape)
    assert out_small.shape == (K, 2, 4, 16, 16)
    assert out_small.dtype == x_small.dtype
    assert bool(jnp.allclose(out_small, ref_small))

    # 2) Larger NCHW input (512 KiB, lane-divisible): exercises the Pallas
    #    kernel path.
    x_big = jax.random.normal(k1, (4, 8, 64, 64), dtype=jnp.float32)
    out_big = jax.block_until_ready(balancer(x_big))
    ref_big = jnp.broadcast_to(x_big[None], (K,) + x_big.shape)
    assert out_big.shape == (K,) + x_big.shape
    assert bool(jnp.allclose(out_big, ref_big))

    # 3) Odd-sized input (1155 elements, not a multiple of 128): exercises the
    #    pad-and-slice kernel path directly (bypassing the small-input fast
    #    path on purpose).
    x_odd = jax.random.normal(k2, (3, 5, 77), dtype=jnp.float32)
    out_odd = jax.block_until_ready(_replicate_pallas(x_odd, 2))
    ref_odd = jnp.broadcast_to(x_odd[None], (2,) + x_odd.shape)
    assert out_odd.shape == (2,) + x_odd.shape
    assert bool(jnp.allclose(out_odd, ref_odd))

    print("KERNEL_OK")
</pallas_src>

<mosaic_0001>
module attributes {stable_mosaic.version = 11 : i64} {
  func.func @_replicate_kernel(%arg0: i32, %arg1: i32, %arg2: memref<32x4096xf32, #tpu.memory_space<vmem>>, %arg3: memref<1x32x4096xf32, #tpu.memory_space<vmem>>) attributes {dimension_semantics = [#tpu.dimension_semantics<parallel>, #tpu.dimension_semantics<arbitrary>], iteration_bounds = array<i64: 1, 3>, scalar_prefetch = 0 : i64, scratch_operands = 0 : i64, tpu.core_type = #tpu.core_type<tc>, window_params = [{transform_indices = @transform_0, window_bounds = array<i64: 32, 4096>}, {transform_indices = @transform_1, window_bounds = array<i64: 1, 32, 4096>}]} {
    %c0 = arith.constant 0 : index
    %c0_0 = arith.constant 0 : index
    %0 = vector.load %arg2[%c0, %c0_0] : memref<32x4096xf32, #tpu.memory_space<vmem>>, vector<32x4096xf32>
    %c0_1 = arith.constant 0 : index
    %c0_2 = arith.constant 0 : index
    %c0_3 = arith.constant 0 : index
    %1 = vector.load %arg3[%c0_1, %c0_2, %c0_3] : memref<1x32x4096xf32, #tpu.memory_space<vmem>>, vector<1x32x4096xf32>
    %2 = vector.shape_cast %1 : vector<1x32x4096xf32> to vector<32x4096xf32>
    %3 = vector.shape_cast %0 : vector<32x4096xf32> to vector<1x32x4096xf32>
    tpu.vector_store %arg3[%c0_1, %c0_2, %c0_3], %3 {strides = array<i32>} : memref<1x32x4096xf32, #tpu.memory_space<vmem>>, vector<1x32x4096xf32>,
    return
  }
  func.func @transform_0(%arg0: i32, %arg1: i32) -> (i32, i32) {
    %c0_i32 = arith.constant 0 : i32
    %c0_i32_0 = arith.constant 0 : i32
    return %arg0, %c0_i32 : i32, i32
  }
  func.func @transform_1(%arg0: i32, %arg1: i32) -> (i32, i32, i32) {
    %c0_i32 = arith.constant 0 : i32
    %c0_i32_0 = arith.constant 0 : i32
    return %arg1, %arg0, %c0_i32 : i32, i32, i32
  }
}

</mosaic_0001>

<llo_original>
// kernel: tpu_custom_call.1
$region0: #{tpu_custom_call.1}
  #allocation0 [shape = 'u32[]', space=smem, size = 0x4, offset = 0x4, fixed_abs, tag = 'smem constant byte address 0x4 - core index']
  #allocation1 [shape = 'u32[144,128]{1,0:T(1,128)}', space=vmem, size = 0x12000, scoped, tag = 'internal scratch']
  %s0 = inlined_call_operand.hbm [shape: f32[32,4096], index: 0, kind: input, shape index: {}]
  %s1 = inlined_call_operand.hbm [shape: f32[3,32,4096], index: 1, kind: output, shape index: {}]
  %s2 = sld [smem:[#allocation0]]
  $region41: #{tpu_custom_call.1} parent=0
    _
  %s4 = ssub.s32 1, %s2
  %s5 = scalar_select 0, %s4, %s2
  $region1: #{tpu_custom_call.1} parent=0
    #allocation2 [shape = 'u8[524288]{0}', space=vmem, size = 0x80000, scoped, tag = 'input window, operand 0, single buffered']
    #allocation3 [shape = 's32[2]{0}', space=sflag, size = 0x8, scoped, tag = 'scoped memory for tpu_custom_call.1']
    #allocation4 [shape = 's32[2]{0}', space=sflag, size = 0x8, scoped, tag = 'scoped memory for tpu_custom_call.1']
    #allocation5 [shape = 'u8[1048576]{0}', space=vmem, size = 0x100000, scoped, tag = 'output window, operand 0']
    %6 = vsyncpa [#allocation3], 0
    %7 = vsyncpa [#allocation4], 0
    %s8 = scalar_lea.sflag [#allocation4], 1
    %9 = vsyncpa %s8, 0
    loop: start=0, step=1, limit=5
    $region2: #{tpu_custom_call.1} parent=1 // loop_pre_header
      _
    $region3: #{tpu_custom_call.1} parent=1 // loop_header
      %s11 = sphi 0, %s15
      %p12 = scmp.ge.s32.totalorder %s11, 5
      %s18 = sphi 0, %s30
      %s19 = sphi 0, %s26
      %s20 = sphi 0, %s18
      %s21 = sphi 0, %s19
      %s22 = sphi 0, %s20
      %s23 = sphi 0, %s21
      %s33 = sphi 0, %s35
      %s36 = sphi 0, %s33
      %s37 = sphi 0, %s36
      %s53 = sphi 0, %s37
      %s61 = sphi 0, %s63
      %s64 = sphi 0, %s61
      %s65 = sphi 0, %s64
      %s81 = sphi 0, %s65
    $region4: #{tpu_custom_call.1} parent=1 // loop_header_branch
      %14 = sbr.rel (%p12) target = $region8
    $region5: #{tpu_custom_call.1} parent=1 // loop_body
      %s16 = ssub.s32 %s11, 1
      %s17 = ssub.s32 %s11, 2
      %s24 = sadd.s32 1, %s19
      %p25 = scmp.ge.s32.totalorder %s24, 3
      %s26 = scalar_select %p25, 0, %s24
      %s27 = sadd.s32 1, %s18
      %s28 = scalar_select %p25, %s27, %s18
      %p29 = scmp.ge.s32.totalorder %s28, 1
      %s30 = scalar_select %p29, 0, %s28
      %s31 = ssub.s32 %s18, %s30
      %p32 = scmp.eq.s32.totalorder %s31, 0
      %s34 = sadd.s32 %s33, 1
      %s35 = scalar_select %p32, %s33, %s34
      %p38 = pneg %p32
      %p39 = scmp.eq.s32.totalorder %s11, 2
      %p40 = por %p38, %p39
      %p41 = scmp.ne.s32.totalorder %s33, %s36
      %p42 = scmp.eq.s32.totalorder %s11, 0
      %p43 = por %p41, %p42
      %p44 = scmp.ne.s32.totalorder %s33, %s36
      %p45 = scmp.eq.s32.totalorder %s16, 2
      %p46 = por %p44, %p45
      %p47 = scmp.ne.s32.totalorder %s36, %s37
      %p48 = scmp.eq.s32.totalorder %s16, 0
      %p49 = por %p47, %p48
      %p50 = scmp.ne.s32.totalorder %s36, %s37
      %p51 = scmp.eq.s32.totalorder %s17, 2
      %p52 = por %p50, %p51
      %p54 = scmp.ne.s32.totalorder %s37, %s53
      %p55 = scmp.eq.s32.totalorder %s17, 0
      %p56 = por %p54, %p55
      %s57 = ssub.s32 %s19, %s26
      %s58 = ssub.s32 %s18, %s30
      %s59 = sor.u32 %s57, %s58
      %p60 = scmp.eq.s32.totalorder %s59, 0
      %s62 = sadd.s32 %s61, 1
      %s63 = scalar_select %p60, %s61, %s62
      %p66 = pneg %p60
      %p67 = scmp.eq.s32.totalorder %s11, 2
      %p68 = por %p66, %p67
      %p69 = scmp.ne.s32.totalorder %s61, %s64
      %p70 = scmp.eq.s32.totalorder %s11, 0
      %p71 = por %p69, %p70
      %p72 = scmp.ne.s32.totalorder %s61, %s64
      %p73 = scmp.eq.s32.totalorder %s16, 2
      %p74 = por %p72, %p73
      %p75 = scmp.ne.s32.totalorder %s64, %s65
      %p76 = scmp.eq.s32.totalorder %s16, 0
      %p77 = por %p75, %p76
      %p78 = scmp.ne.s32.totalorder %s64, %s65
      %p79 = scmp.eq.s32.totalorder %s17, 2
      %p80 = por %p78, %p79
      %p82 = scmp.ne.s32.totalorder %s65, %s81
      %p83 = scmp.eq.s32.totalorder %s17, 0
      %p84 = por %p82, %p83
      %p85 = scmp.le.s32.totalorder 1, %s11
      %p86 = scmp.lt.s32.totalorder %s11, 4
      %p87 = pnand %p85, %p86
      %p88 = pneg %p87
      // Predicated region
      $region9: #{tpu_custom_call.1} parent=5 // pred_check
        _
      $region10: #{tpu_custom_call.1} parent=5 // pred_check_branch
        %90 = sbr.rel (%p87) target = $region12
      $region11: #{tpu_custom_call.1} parent=5 // pred_region
        %s91 = ssub.s32 %s11, 1
        // Predicated region
        $region13: #{tpu_custom_call.1} parent=11 // pred_check
          %p92 = pneg %p49
        $region14: #{tpu_custom_call.1} parent=11 // pred_check_branch
          %94 = sbr.rel (%p92) target = $region16
        $region15: #{tpu_custom_call.1} parent=11 // pred_region
          %s95 = smul.u32 4, %s20
          %s97 = ssub.s32 16384, 16384
          %98 = vsyncadd [#allocation3], %s97
          %s99 = smul.addr %s95, 32
          %s100 = smul.addr %s99, 128
          %s101 = scalar_lea.hbm %s0, %s100
          %s102 = sshll.u32 [#allocation2], 4
          %s103 = int_to_ptr.vmem [resolvable:$true] %s102
          %108 = dma.hbm_to_vmem [thread:$0]  %s101, 16384, %s103, [#allocation3], 4096, 4096, 256
        $region16: #{tpu_custom_call.1} parent=11 // pred_fallthru
          _
      $region12: #{tpu_custom_call.1} parent=5 // pred_fallthru
        _
      %p109 = scmp.lt.s32.totalorder %s11, 3
      // Predicated region
      $region17: #{tpu_custom_call.1} parent=5 // pred_check
        %p110 = pneg %p109
      $region18: #{tpu_custom_call.1} parent=5 // pred_check_branch
        %112 = sbr.rel (%p110) target = $region20
      $region19: #{tpu_custom_call.1} parent=5 // pred_region
        _
      $region20: #{tpu_custom_call.1} parent=5 // pred_fallthru
        _
      %p113 = scmp.le.s32.totalorder 1, %s11
      %p114 = scmp.lt.s32.totalorder %s11, 4
      %p115 = pnand %p113, %p114
      %p116 = pneg %p115
      // Predicated region
      $region21: #{tpu_custom_call.1} parent=5 // pred_check
        _
      $region22: #{tpu_custom_call.1} parent=5 // pred_check_branch
        %118 = sbr.rel (%p115) target = $region24
      $region23: #{tpu_custom_call.1} parent=5 // pred_region
        %s119 = ssub.s32 %s11, 1
        // Predicated region
        $region25: #{tpu_custom_call.1} parent=23 // pred_check
          %p120 = pneg %p49
        $region26: #{tpu_custom_call.1} parent=23 // pred_check_branch
          %122 = sbr.rel (%p120) target = $region28
        $region27: #{tpu_custom_call.1} parent=23 // pred_region
          %123 = dma.done [#allocation3], 16384
        $region28: #{tpu_custom_call.1} parent=23 // pred_fallthru
          _
        %p124 = pneg %p49
        %p125 = pneg %p46
        %p126 = pneg %p77
        %p127 = pneg %p74
        %s128 = sand.u32 %s64, 1
        %s129 = scalar_lea.sflag [#allocation4], %s128
        %s130 = sand.u32 %s64, 1
        %s131 = smul.addr %s130, 1024
        %s132 = scalar_lea.vmem [#allocation5], %s131
        %s133 = smul.u32 4, %s20
        %s134 = smul.u32 4, %s20
        %v135 = vld [vmem:[#allocation2] sm:$0xff]
        %v136 = vld [vmem:[#allocation2 + $0x8] sm:$0xff]
        %v137 = vld [vmem:[#allocation2 + $0x10] sm:$0xff]
        %v138 = vld [vmem:[#allocation2 + $0x18] sm:$0xff]
        %v139 = vld [vmem:[#allocation2 + $0x20] sm:$0xff]
        %v140 = vld [vmem:[#allocation2 + $0x28] sm:$0xff]
        %v141 = vld [vmem:[#allocation2 + $0x30] sm:$0xff]
        %v142 = vld [vmem:[#allocation2 + $0x38] sm:$0xff]
        %v143 = vld [vmem:[#allocation2 + $0x40] sm:$0xff]
        %v144 = vld [vmem:[#allocation2 + $0x48] sm:$0xff]
        %v145 = vld [vmem:[#allocation2 + $0x50] sm:$0xff]
        %v146 = vld [vmem:[#allocation2 + $0x58] sm:$0xff]
        %v147 = vld [vmem:[#allocation2 + $0x60] sm:$0xff]
        %v148 = vld [vmem:[#allocation2 + $0x68] sm:$0xff]
        %v149 = vld [vmem:[#allocation2 + $0x70] sm:$0xff]
        %v150 = vld [vmem:[#allocation2 + $0x78] sm:$0xff]
        %v151 = vld [vmem:[#allocation2 + $0x80] sm:$0xff]
        %v152 = vld [vmem:[#allocation2 + $0x88] sm:$0xff]
        %v153 = vld [vmem:[#allocation2 + $0x90] sm:$0xff]
        %v154 = vld [vmem:[#allocation2 + $0x98] sm:$0xff]
        %v155 = vld [vmem:[#allocation2 + $0xa0] sm:$0xff]
        %v156 = vld [vmem:[#allocation2 + $0xa8] sm:$0xff]
        %v157 = vld [vmem:[#allocation2 + $0xb0] sm:$0xff]
        %v158 = vld [vmem:[#allocation2 + $0xb8] sm:$0xff]
        %v159 = vld [vmem:[#allocation2 + $0xc0] sm:$0xff]
        %v160 = vld [vmem:[#allocation2 + $0xc8] sm:$0xff]
        %v161 = vld [vmem:[#allocation2 + $0xd0] sm:$0xff]
        %v162 = vld [vmem:[#allocation2 + $0xd8] sm:$0xff]
        %v163 = vld [vmem:[#allocation2 + $0xe0] sm:$0xff]
        %v164 = vld [vmem:[#allocation2 + $0xe8] sm:$0xff]
        %v165 = vld [vmem:[#allocation2 + $0xf0] sm:$0xff]
        %v166 = vld [vmem:[#allocation2 + $0xf8] sm:$0xff]
        %v167 = vld [vmem:[#allocation2 + $0x100] sm:$0xff]
        %v168 = vld [vmem:[#allocation2 + $0x108] sm:$0xff]
        %v169 = vld [vmem:[#allocation2 + $0x110] sm:$0xff]
        %v170 = vld [vmem:[#allocation2 + $0x118] sm:$0xff]
        %v171 = vld [vmem:[#allocation2 + $0x120] sm:$0xff]
        %v172 = vld [vmem:[#allocation2 + $0x128] sm:$0xff]
        %v173 = vld [vmem:[#allocation2 + $0x130] sm:$0xff]
        %v174 = vld [vmem:[#allocation2 + $0x138] sm:$0xff]
        %v175 = vld [vmem:[#allocation2 + $0x140] sm:$0xff]
        %v176 = vld [vmem:[#allocation2 + $0x148] sm:$0xff]
        %v177 = vld [vmem:[#allocation2 + $0x150] sm:$0xff]
        %v178 = vld [vmem:[#allocation2 + $0x158] sm:$0xff]
        %v179 = vld [vmem:[#allocation2 + $0x160] sm:$0xff]
        %v180 = vld [vmem:[#allocation2 + $0x168] sm:$0xff]
        %v181 = vld [vmem:[#allocation2 + $0x170] sm:$0xff]
        %v182 = vld [vmem:[#allocation2 + $0x178] sm:$0xff]
        %v183 = vld [vmem:[#allocation2 + $0x180] sm:$0xff]
        %v184 = vld [vmem:[#allocation2 + $0x188] sm:$0xff]
        %v185 = vld [vmem:[#allocation2 + $0x190] sm:$0xff]
        %v186 = vld [vmem:[#allocation2 + $0x198] sm:$0xff]
        %v187 = vld [vmem:[#allocation2 + $0x1a0] sm:$0xff]
        %v188 = vld [vmem:[#allocation2 + $0x1a8] sm:$0xff]
        %v189 = vld [vmem:[#allocation2 + $0x1b0] sm:$0xff]
        %v190 = vld [vmem:[#allocation2 + $0x1b8] sm:$0xff]
        %v191 = vld [vmem:[#allocation2 + $0x1c0] sm:$0xff]
        %v192 = vld [vmem:[#allocation2 + $0x1c8] sm:$0xff]
        %v193 = vld [vmem:[#allocation2 + $0x1d0] sm:$0xff]
        %v194 = vld [vmem:[#allocation2 + $0x1d8] sm:$0xff]
        %v195 = vld [vmem:[#allocation2 + $0x1e0] sm:$0xff]
        %v196 = vld [vmem:[#allocation2 + $0x1e8] sm:$0xff]
        %v197 = vld [vmem:[#allocation2 + $0x1f0] sm:$0xff]
        %v198 = vld [vmem:[#allocation2 + $0x1f8] sm:$0xff]
        %v199 = vld [vmem:[#allocation2 + $0x200] sm:$0xff]
        %v200 = vld [vmem:[#allocation2 + $0x208] sm:$0xff]
        %v201 = vld [vmem:[#allocation2 + $0x210] sm:$0xff]
        %v202 = vld [vmem:[#allocation2 + $0x218] sm:$0xff]
        %v203 = vld [vmem:[#allocation2 + $0x220] sm:$0xff]
        %v204 = vld [vmem:[#allocation2 + $0x228] sm:$0xff]
        %v205 = vld [vmem:[#allocation2 + $0x230] sm:$0xff]
        %v206 = vld [vmem:[#allocation2 + $0x238] sm:$0xff]
        %v207 = vld [vmem:[#allocation2 + $0x240] sm:$0xff]
        %v208 = vld [vmem:[#allocation2 + $0x248] sm:$0xff]
        %v209 = vld [vmem:[#allocation2 + $0x250] sm:$0xff]
        %v210 = vld [vmem:[#allocation2 + $0x258] sm:$0xff]
        %v211 = vld [vmem:[#allocation2 + $0x260] sm:$0xff]
        %v212 = vld [vmem:[#allocation2 + $0x268] sm:$0xff]
        %v213 = vld [vmem:[#allocation2 + $0x270] sm:$0xff]
        %v214 = vld [vmem:[#allocation2 + $0x278] sm:$0xff]
        %v215 = vld [vmem:[#allocation2 + $0x280] sm:$0xff]
        %v216 = vld [vmem:[#allocation2 + $0x288] sm:$0xff]
        %v217 = vld [vmem:[#allocation2 + $0x290] sm:$0xff]
        %v218 = vld [vmem:[#allocation2 + $0x298] sm:$0xff]
        %v219 = vld [vmem:[#allocation2 + $0x2a0] sm:$0xff]
        %v220 = vld [vmem:[#allocation2 + $0x2a8] sm:$0xff]
        %v221 = vld [vmem:[#allocation2 + $0x2b0] sm:$0xff]
        %v222 = vld [vmem:[#allocation2 + $0x2b8] sm:$0xff]
        %v223 = vld [vmem:[#allocation2 + $0x2c0] sm:$0xff]
        %v224 = vld [vmem:[#allocation2 + $0x2c8] sm:$0xff]
        %v225 = vld [vmem:[#allocation2 + $0x2d0] sm:$0xff]
        %v226 = vld [vmem:[#allocation2 + $0x2d8] sm:$0xff]
        %v227 = vld [vmem:[#allocation2 + $0x2e0] sm:$0xff]
        %v228 = vld [vmem:[#allocation2 + $0x2e8] sm:$0xff]
        %v229 = vld [vmem:[#allocation2 + $0x2f0] sm:$0xff]
        %v230 = vld [vmem:[#allocation2 + $0x2f8] sm:$0xff]
        %v231 = vld [vmem:[#allocation2 + $0x300] sm:$0xff]
        %v232 = vld [vmem:[#allocation2 + $0x308] sm:$0xff]
        %v233 = vld [vmem:[#allocation2 + $0x310] sm:$0xff]
        %v234 = vld [vmem:[#allocation2 + $0x318] sm:$0xff]
        %v235 = vld [vmem:[#allocation2 + $0x320] sm:$0xff]
        %v236 = vld [vmem:[#allocation2 + $0x328] sm:$0xff]
        %v237 = vld [vmem:[#allocation2 + $0x330] sm:$0xff]
        %v238 = vld [vmem:[#allocation2 + $0x338] sm:$0xff]
        %v239 = vld [vmem:[#allocation2 + $0x340] sm:$0xff]
        %v240 = vld [vmem:[#allocation2 + $0x348] sm:$0xff]
        %v241 = vld [vmem:[#allocation2 + $0x350] sm:$0xff]
        %v242 = vld [vmem:[#allocation2 + $0x358] sm:$0xff]
        %v243 = vld [vmem:[#allocation2 + $0x360] sm:$0xff]
        %v244 = vld [vmem:[#allocation2 + $0x368] sm:$0xff]
        %v245 = vld [vmem:[#allocation2 + $0x370] sm:$0xff]
        %v246 = vld [vmem:[#allocation2 + $0x378] sm:$0xff]
        %v247 = vld [vmem:[#allocation2 + $0x380] sm:$0xff]
        %v248 = vld [vmem:[#allocation2 + $0x388] sm:$0xff]
        %v249 = vld [vmem:[#allocation2 + $0x390] sm:$0xff]
        %v250 = vld [vmem:[#allocation2 + $0x398] sm:$0xff]
        %v251 = vld [vmem:[#allocation2 + $0x3a0] sm:$0xff]
        %v252 = vld [vmem:[#allocation2 + $0x3a8] sm:$0xff]
        %v253 = vld [vmem:[#allocation2 + $0x3b0] sm:$0xff]
        %v254 = vld [vmem:[#allocation2 + $0x3b8] sm:$0xff]
        %v255 = vld [vmem:[#allocation2 + $0x3c0] sm:$0xff]
        %v256 = vld [vmem:[#allocation2 + $0x3c8] sm:$0xff]
        %v257 = vld [vmem:[#allocation2 + $0x3d0] sm:$0xff]
        %v258 = vld [vmem:[#allocation2 + $0x3d8] sm:$0xff]
        %v259 = vld [vmem:[#allocation2 + $0x3e0] sm:$0xff]
        %v260 = vld [vmem:[#allocation2 + $0x3e8] sm:$0xff]
        %v261 = vld [vmem:[#allocation2 + $0x3f0] sm:$0xff]
        %v262 = vld [vmem:[#allocation2 + $0x3f8] sm:$0xff]
        %263 = vst [vmem:[%s132] sm:$0xff] %v135
        %264 = vst [vmem:[%s132 + $0x8] sm:$0xff] %v136
        %265 = vst [vmem:[%s132 + $0x10] sm:$0xff] %v137
        %266 = vst [vmem:[%s132 + $0x18] sm:$0xff] %v138
        %267 = vst [vmem:[%s132 + $0x20] sm:$0xff] %v139
        %268 = vst [vmem:[%s132 + $0x28] sm:$0xff] %v140
        %269 = vst [vmem:[%s132 + $0x30] sm:$0xff] %v141
        %270 = vst [vmem:[%s132 + $0x38] sm:$0xff] %v142
        %271 = vst [vmem:[%s132 + $0x40] sm:$0xff] %v143
        %272 = vst [vmem:[%s132 + $0x48] sm:$0xff] %v144
        %273 = vst [vmem:[%s132 + $0x50] sm:$0xff] %v145
        %274 = vst [vmem:[%s132 + $0x58] sm:$0xff] %v146
        %275 = vst [vmem:[%s132 + $0x60] sm:$0xff] %v147
        %276 = vst [vmem:[%s132 + $0x68] sm:$0xff] %v148
        %277 = vst [vmem:[%s132 + $0x70] sm:$0xff] %v149
        %278 = vst [vmem:[%s132 + $0x78] sm:$0xff] %v150
        %279 = vst [vmem:[%s132 + $0x80] sm:$0xff] %v151
        %280 = vst [vmem:[%s132 + $0x88] sm:$0xff] %v152
        %281 = vst [vmem:[%s132 + $0x90] sm:$0xff] %v153
        %282 = vst [vmem:[%s132 + $0x98] sm:$0xff] %v154
        %283 = vst [vmem:[%s132 + $0xa0] sm:$0xff] %v155
        %284 = vst [vmem:[%s132 + $0xa8] sm:$0xff] %v156
        %285 = vst [vmem:[%s132 + $0xb0] sm:$0xff] %v157
        %286 = vst [vmem:[%s132 + $0xb8] sm:$0xff] %v158
        %287 = vst [vmem:[%s132 + $0xc0] sm:$0xff] %v159
        %288 = vst [vmem:[%s132 + $0xc8] sm:$0xff] %v160
        %289 = vst [vmem:[%s132 + $0xd0] sm:$0xff] %v161
        %290 = vst [vmem:[%s132 + $0xd8] sm:$0xff] %v162
        %291 = vst [vmem:[%s132 + $0xe0] sm:$0xff] %v163
        %292 = vst [vmem:[%s132 + $0xe8] sm:$0xff] %v164
        %293 = vst [vmem:[%s132 + $0xf0] sm:$0xff] %v165
        %294 = vst [vmem:[%s132 + $0xf8] sm:$0xff] %v166
        %295 = vst [vmem:[%s132 + $0x100] sm:$0xff] %v167
        %296 = vst [vmem:[%s132 + $0x108] sm:$0xff] %v168
        %297 = vst [vmem:[%s132 + $0x110] sm:$0xff] %v169
        %298 = vst [vmem:[%s132 + $0x118] sm:$0xff] %v170
        %299 = vst [vmem:[%s132 + $0x120] sm:$0xff] %v171
        %300 = vst [vmem:[%s132 + $0x128] sm:$0xff] %v172
        %301 = vst [vmem:[%s132 + $0x130] sm:$0xff] %v173
        %302 = vst [vmem:[%s132 + $0x138] sm:$0xff] %v174
        %303 = vst [vmem:[%s132 + $0x140] sm:$0xff] %v175
        %304 = vst [vmem:[%s132 + $0x148] sm:$0xff] %v176
        %305 = vst [vmem:[%s132 + $0x150] sm:$0xff] %v177
        %306 = vst [vmem:[%s132 + $0x158] sm:$0xff] %v178
        %307 = vst [vmem:[%s132 + $0x160] sm:$0xff] %v179
        %308 = vst [vmem:[%s132 + $0x168] sm:$0xff] %v180
        %309 = vst [vmem:[%s132 + $0x170] sm:$0xff] %v181
        %310 = vst [vmem:[%s132 + $0x178] sm:$0xff] %v182
        %311 = vst [vmem:[%s132 + $0x180] sm:$0xff] %v183
        %312 = vst [vmem:[%s132 + $0x188] sm:$0xff] %v184
        %313 = vst [vmem:[%s132 + $0x190] sm:$0xff] %v185
        %314 = vst [vmem:[%s132 + $0x198] sm:$0xff] %v186
        %315 = vst [vmem:[%s132 + $0x1a0] sm:$0xff] %v187
        %316 = vst [vmem:[%s132 + $0x1a8] sm:$0xff] %v188
        %317 = vst [vmem:[%s132 + $0x1b0] sm:$0xff] %v189
        %318 = vst [vmem:[%s132 + $0x1b8] sm:$0xff] %v190
        %319 = vst [vmem:[%s132 + $0x1c0] sm:$0xff] %v191
        %320 = vst [vmem:[%s132 + $0x1c8] sm:$0xff] %v192
        %321 = vst [vmem:[%s132 + $0x1d0] sm:$0xff] %v193
        %322 = vst [vmem:[%s132 + $0x1d8] sm:$0xff] %v194
        %323 = vst [vmem:[%s132 + $0x1e0] sm:$0xff] %v195
        %324 = vst [vmem:[%s132 + $0x1e8] sm:$0xff] %v196
        %325 = vst [vmem:[%s132 + $0x1f0] sm:$0xff] %v197
        %326 = vst [vmem:[%s132 + $0x1f8] sm:$0xff] %v198
        %327 = vst [vmem:[%s132 + $0x200] sm:$0xff] %v199
        %328 = vst [vmem:[%s132 + $0x208] sm:$0xff] %v200
        %329 = vst [vmem:[%s132 + $0x210] sm:$0xff] %v201
        %330 = vst [vmem:[%s132 + $0x218] sm:$0xff] %v202
        %331 = vst [vmem:[%s132 + $0x220] sm:$0xff] %v203
        %332 = vst [vmem:[%s132 + $0x228] sm:$0xff] %v204
        %333 = vst [vmem:[%s132 + $0x230] sm:$0xff] %v205
        %334 = vst [vmem:[%s132 + $0x238] sm:$0xff] %v206
        %335 = vst [vmem:[%s132 + $0x240] sm:$0xff] %v207
        %336 = vst [vmem:[%s132 + $0x248] sm:$0xff] %v208
        %337 = vst [vmem:[%s132 + $0x250] sm:$0xff] %v209
        %338 = vst [vmem:[%s132 + $0x258] sm:$0xff] %v210
        %339 = vst [vmem:[%s132 + $0x260] sm:$0xff] %v211
        %340 = vst [vmem:[%s132 + $0x268] sm:$0xff] %v212
        %341 = vst [vmem:[%s132 + $0x270] sm:$0xff] %v213
        %342 = vst [vmem:[%s132 + $0x278] sm:$0xff] %v214
        %343 = vst [vmem:[%s132 + $0x280] sm:$0xff] %v215
        %344 = vst [vmem:[%s132 + $0x288] sm:$0xff] %v216
        %345 = vst [vmem:[%s132 + $0x290] sm:$0xff] %v217
        %346 = vst [vmem:[%s132 + $0x298] sm:$0xff] %v218
        %347 = vst [vmem:[%s132 + $0x2a0] sm:$0xff] %v219
        %348 = vst [vmem:[%s132 + $0x2a8] sm:$0xff] %v220
        %349 = vst [vmem:[%s132 + $0x2b0] sm:$0xff] %v221
        %350 = vst [vmem:[%s132 + $0x2b8] sm:$0xff] %v222
        %351 = vst [vmem:[%s132 + $0x2c0] sm:$0xff] %v223
        %352 = vst [vmem:[%s132 + $0x2c8] sm:$0xff] %v224
        %353 = vst [vmem:[%s132 + $0x2d0] sm:$0xff] %v225
        %354 = vst [vmem:[%s132 + $0x2d8] sm:$0xff] %v226
        %355 = vst [vmem:[%s132 + $0x2e0] sm:$0xff] %v227
        %356 = vst [vmem:[%s132 + $0x2e8] sm:$0xff] %v228
        %357 = vst [vmem:[%s132 + $0x2f0] sm:$0xff] %v229
        %358 = vst [vmem:[%s132 + $0x2f8] sm:$0xff] %v230
        %359 = vst [vmem:[%s132 + $0x300] sm:$0xff] %v231
        %360 = vst [vmem:[%s132 + $0x308] sm:$0xff] %v232
        %361 = vst [vmem:[%s132 + $0x310] sm:$0xff] %v233
        %362 = vst [vmem:[%s132 + $0x318] sm:$0xff] %v234
        %363 = vst [vmem:[%s132 + $0x320] sm:$0xff] %v235
        %364 = vst [vmem:[%s132 + $0x328] sm:$0xff] %v236
        %365 = vst [vmem:[%s132 + $0x330] sm:$0xff] %v237
        %366 = vst [vmem:[%s132 + $0x338] sm:$0xff] %v238
        %367 = vst [vmem:[%s132 + $0x340] sm:$0xff] %v239
        %368 = vst [vmem:[%s132 + $0x348] sm:$0xff] %v240
        %369 = vst [vmem:[%s132 + $0x350] sm:$0xff] %v241
        %370 = vst [vmem:[%s132 + $0x358] sm:$0xff] %v242
        %371 = vst [vmem:[%s132 + $0x360] sm:$0xff] %v243
        %372 = vst [vmem:[%s132 + $0x368] sm:$0xff] %v244
        %373 = vst [vmem:[%s132 + $0x370] sm:$0xff] %v245
        %374 = vst [vmem:[%s132 + $0x378] sm:$0xff] %v246
        %375 = vst [vmem:[%s132 + $0x380] sm:$0xff] %v247
        %376 = vst [vmem:[%s132 + $0x388] sm:$0xff] %v248
        %377 = vst [vmem:[%s132 + $0x390] sm:$0xff] %v249
        %378 = vst [vmem:[%s132 + $0x398] sm:$0xff] %v250
        %379 = vst [vmem:[%s132 + $0x3a0] sm:$0xff] %v251
        %380 = vst [vmem:[%s132 + $0x3a8] sm:$0xff] %v252
        %381 = vst [vmem:[%s132 + $0x3b0] sm:$0xff] %v253
        %382 = vst [vmem:[%s132 + $0x3b8] sm:$0xff] %v254
        %383 = vst [vmem:[%s132 + $0x3c0] sm:$0xff] %v255
        %384 = vst [vmem:[%s132 + $0x3c8] sm:$0xff] %v256
        %385 = vst [vmem:[%s132 + $0x3d0] sm:$0xff] %v257
        %386 = vst [vmem:[%s132 + $0x3d8] sm:$0xff] %v258
        %387 = vst [vmem:[%s132 + $0x3e0] sm:$0xff] %v259
        %388 = vst [vmem:[%s132 + $0x3e8] sm:$0xff] %v260
        %389 = vst [vmem:[%s132 + $0x3f0] sm:$0xff] %v261
        %390 = vst [vmem:[%s132 + $0x3f8] sm:$0xff] %v262
        %s391 = sand.u32 %s64, 1
        %s392 = scalar_lea.sflag [#allocation4], %s391
        %s393 = sand.u32 %s64, 1
        %s394 = smul.addr %s393, 1024
        %s395 = scalar_lea.vmem [#allocation5], %s394
        // Predicated region
        $region29: #{tpu_custom_call.1} parent=23 // pred_check
          %p396 = pneg %p74
        $region30: #{tpu_custom_call.1} parent=23 // pred_check_branch
          %398 = sbr.rel (%p396) target = $region32
        $region31: #{tpu_custom_call.1} parent=23 // pred_region
          %s399 = smul.u32 4, %s20
          %s401 = ssub.s32 16384, 16384
          %402 = vsyncadd %s392, %s401
          %s403 = smul.addr %s399, 32
          %s404 = smul.addr %s21, 128
          %s405 = sadd.s32 %s403, %s404
          %s406 = smul.addr %s405, 128
          %s407 = scalar_lea.hbm %s1, %s406
          %s408 = sshll.u32 %s395, 4
          %s409 = int_to_ptr.vmem [resolvable:$true] %s408
          %414 = dma.vmem_to_hbm [thread:$0]  %s409, 16384, %s407, %s392, 4096, 4096, 256
        $region32: #{tpu_custom_call.1} parent=23 // pred_fallthru
          _
      $region24: #{tpu_custom_call.1} parent=5 // pred_fallthru
        _
      %p415 = scmp.le.s32.totalorder 2, %s11
      // Predicated region
      $region33: #{tpu_custom_call.1} parent=5 // pred_check
        %p416 = pneg %p415
      $region34: #{tpu_custom_call.1} parent=5 // pred_check_branch
        %418 = sbr.rel (%p416) target = $region36
      $region35: #{tpu_custom_call.1} parent=5 // pred_region
        %s419 = ssub.s32 %s11, 2
        // Predicated region
        $region37: #{tpu_custom_call.1} parent=35 // pred_check
          %p420 = pneg %p80
        $region38: #{tpu_custom_call.1} parent=35 // pred_check_branch
          %422 = sbr.rel (%p420) target = $region40
        $region39: #{tpu_custom_call.1} parent=35 // pred_region
          %s423 = sand.u32 %s65, 1
          %s424 = scalar_lea.sflag [#allocation4], %s423
          %s425 = sand.u32 %s65, 1
          %s426 = smul.addr %s425, 1024
          %s427 = scalar_lea.vmem [#allocation5], %s426
          %428 = dma.done %s424, 16384
        $region40: #{tpu_custom_call.1} parent=35 // pred_fallthru
          _
      $region36: #{tpu_custom_call.1} parent=5 // pred_fallthru
        _
    $region6: #{tpu_custom_call.1} parent=1 // loop_footer
      %s15 = sadd.s32 1, %s11
    $region7: #{tpu_custom_call.1} parent=1 // loop_footer_branch
      %10 = sbr.rel target = $region3
    $region8: #{tpu_custom_call.1} parent=1 // loop_exit
      _
    %429 = vsyncpa [#allocation3], 1
    %s430 = scalar_lea.sflag [#allocation3], 1
    %431 = vsyncpa %s430, 1
    %432 = vsyncpa [#allocation4], 1
    %s433 = scalar_lea.sflag [#allocation4], 1
    %434 = vsyncpa %s433, 1

</llo_original>
